<compile_context>
chip_gen: v6e
topology: v6e:2x2x1
jax: 0.10.0
libtpu: 0.0.40
codegen_flags: <defaults>
</compile_context>

<pallas_src>
import jax
import jax.numpy as jnp
from jax.experimental import pallas as pl
from jax.experimental.pallas import tpu as pltpu


def _round_up(x, m):
    return ((x + m - 1) // m) * m


# ----------------------------------------------------------------------------
# Kernel body: one batch tile -> fc1 + bias + ReLU -> fc2 + bias
# ----------------------------------------------------------------------------
def mlp_kernel(x_ref, w1_ref, b1_ref, w2_ref, b2_ref, o_ref):
    # In-kernel bf16 cast of the f32 input tile (VPU has slack; saves the
    # wrapper-side cast pass over x).
    x_bf = x_ref[...].astype(jnp.bfloat16)
    # fc1: bf16 operands on the MXU, f32 accumulation.
    h = jnp.dot(x_bf, w1_ref[...], preferred_element_type=jnp.float32)
    h = jnp.maximum(h + b1_ref[...], 0.0)          # bias + ReLU in f32 (VPU)
    # dropout1: identity at inference (see TODO at top of file).
    # fc2: bf16 activations on the MXU, f32 accumulation.
    out = jnp.dot(h.astype(jnp.bfloat16), w2_ref[...],
                  preferred_element_type=jnp.float32)
    o_ref[...] = (out + b2_ref[...]).astype(o_ref.dtype)


# ----------------------------------------------------------------------------
# One-time parameter preparation (hoisted out of the forward path)
# ----------------------------------------------------------------------------
def prepare_params(w1, b1, w2, b2):
    """Pad + cast weights ONCE (at init). Weights stored (in_features, out_features).

    Returns a dict of device-ready params consumed by `mlp_net`.
    """
    max_words, hidden = w1.shape
    num_classes = w2.shape[1]
    K_pad = _round_up(max_words, 128)      # lane-aligned K for x / w1 blocks
    N_pad = _round_up(num_classes, 128)    # lane-dense output columns

    w1_p = jnp.pad(w1, ((0, K_pad - max_words), (0, 0))).astype(jnp.bfloat16)
    w2_p = jnp.pad(w2, ((0, 0), (0, N_pad - num_classes))).astype(jnp.bfloat16)
    b1_p = jnp.asarray(b1, jnp.float32).reshape(1, hidden)
    b2_p = jnp.pad(jnp.asarray(b2, jnp.float32).reshape(1, num_classes),
                   ((0, 0), (0, N_pad - num_classes)))

    return dict(w1=w1_p, b1=b1_p, w2=w2_p, b2=b2_p,
                max_words=max_words, num_classes=num_classes)


def _choose_block_b(B, max_block):
    """Batch tile: multiple of 16 (bf16 sublane packing), multiple of 128 for
    large batches (full MXU M passes), and >= 2 grid steps when B allows so the
    'parallel' grid axis can feed both TensorCores on v7x."""
    if B <= 16:
        return 16
    align = 128 if B >= 256 else 16
    return max(16, min(max_block, _round_up(pl.cdiv(B, 2), align)))


# ----------------------------------------------------------------------------
# Forward pass
# ----------------------------------------------------------------------------
def mlp_net(x, params, *, max_block_b=256, slice_output=True):
    """x: [B, max_words] f32. Returns logits [B, num_classes] f32
    (or the padded [B_pad, N_pad] slab if slice_output=False)."""
    w1, b1, w2, b2 = params["w1"], params["b1"], params["w2"], params["b2"]
    num_classes = params["num_classes"]
    K_pad, hidden = w1.shape
    N_pad = w2.shape[1]
    B = x.shape[0]

    # K padding of x (ideally done in the data pipeline; no-op at aligned K).
    if x.shape[1] != K_pad:
        x = jnp.pad(x, ((0, 0), (0, K_pad - x.shape[1])))

    block_b = _choose_block_b(B, max_block_b)
    B_pad = _round_up(B, block_b)
    if B_pad != B:
        x = jnp.pad(x, ((0, B_pad - B), (0, 0)))

    grid = (B_pad // block_b,)

    # VMEM budget: block buffers (+ double-buffering on the moving blocks only)
    # with ~50% headroom, capped well under v7x's 64 MiB/TC physical VMEM.
    block_bytes = (
        2 * block_b * K_pad * 4        # x tile (f32), double-buffered
        + K_pad * hidden * 2           # w1 bf16, Buffered(1)
        + hidden * 4                   # b1 f32, Buffered(1)
        + hidden * N_pad * 2           # w2 bf16, Buffered(1)
        + N_pad * 4                    # b2 f32, Buffered(1)
        + 2 * block_b * N_pad * 4      # out tile (f32), double-buffered
    )
    vmem_limit = min(max(int(block_bytes * 1.5), 16 * 1024 * 1024),
                     48 * 1024 * 1024)

    out = pl.pallas_call(
        mlp_kernel,
        out_shape=jax.ShapeDtypeStruct((B_pad, N_pad), jnp.float32),
        grid_spec=pltpu.PrefetchScalarGridSpec(
            num_scalar_prefetch=0,
            grid=grid,
            in_specs=[
                # batch tile of the input (f32, cast to bf16 inside the kernel)
                pl.BlockSpec((block_b, K_pad), lambda i: (i, 0)),
                # weights / biases: constant index_map -> single-buffered
                pl.BlockSpec((K_pad, hidden), lambda i: (0, 0),
                             pipeline_mode=pl.Buffered(1)),
                pl.BlockSpec((1, hidden), lambda i: (0, 0),
                             pipeline_mode=pl.Buffered(1)),
                pl.BlockSpec((hidden, N_pad), lambda i: (0, 0),
                             pipeline_mode=pl.Buffered(1)),
                pl.BlockSpec((1, N_pad), lambda i: (0, 0),
                             pipeline_mode=pl.Buffered(1)),
            ],
            out_specs=pl.BlockSpec((block_b, N_pad), lambda i: (i, 0)),
        ),
        compiler_params=pltpu.CompilerParams(
            dimension_semantics=("parallel",),   # shards grid steps across TCs
            vmem_limit_bytes=vmem_limit,
        ),
    )(x, w1, b1, w2, b2)

    if slice_output:
        return out[:B, :num_classes]
    return out


# ----------------------------------------------------------------------------
# Deterministic init mimicking torch.nn.Linear (uniform +/- 1/sqrt(fan_in))
# ----------------------------------------------------------------------------
def init_params(key, max_words, hidden, num_classes):
    k1, k2, k3, k4 = jax.random.split(key, 4)
    bound1 = 1.0 / jnp.sqrt(max_words)
    bound2 = 1.0 / jnp.sqrt(hidden)
    # stored as (in_features, out_features) == torch weight transposed
    w1 = jax.random.uniform(k1, (max_words, hidden), jnp.float32, -bound1, bound1)
    b1 = jax.random.uniform(k2, (1, hidden), jnp.float32, -bound1, bound1)
    w2 = jax.random.uniform(k3, (hidden, num_classes), jnp.float32, -bound2, bound2)
    b2 = jax.random.uniform(k4, (1, num_classes), jnp.float32, -bound2, bound2)
    return w1, b1, w2, b2


if __name__ == "__main__":
    # Small shapes consistent with the Reuters MLP:
    #   max_words (bag-of-words features) = 256, hidden = 512, classes = 46
    B, MAX_WORDS, HIDDEN, NUM_CLASSES = 64, 256, 512, 46

    key = jax.random.PRNGKey(0)
    kx, kp = jax.random.split(key)
    x = jax.random.normal(kx, (B, MAX_WORDS), jnp.float32)
    w1, b1, w2, b2 = init_params(kp, MAX_WORDS, HIDDEN, NUM_CLASSES)

    # One-time param prep (pad + bf16 cast) — NOT part of the forward path.
    params = jax.tree_util.tree_map(
        lambda t: jax.block_until_ready(t) if isinstance(t, jax.Array) else t,
        prepare_params(w1, b1, w2, b2))

    out = mlp_net(x, params)
    out = jax.block_until_ready(out)
    assert out.shape == (B, NUM_CLASSES)

    # Reference with the same bf16-operand / f32-accumulate numerics as the kernel.
    xb, w1b, w2b = (t.astype(jnp.bfloat16) for t in (x, w1, w2))
    h_ref = jnp.maximum(jnp.dot(xb, w1b, preferred_element_type=jnp.float32) + b1, 0.0)
    ref = jnp.dot(h_ref.astype(jnp.bfloat16), w2b,
                  preferred_element_type=jnp.float32) + b2
    assert jnp.allclose(out, ref, atol=1e-2, rtol=1e-2)

    # Sanity vs. full-f32 math (looser: bf16 operand rounding).
    ref_f32 = jnp.maximum(x @ w1 + b1, 0.0) @ w2 + b2
    assert jnp.allclose(out, ref_f32, atol=5e-2, rtol=5e-2)

    print("KERNEL_OK")
</pallas_src>

<mosaic_0001>
module attributes {stable_mosaic.version = 11 : i64} {
  func.func @mlp_kernel(%arg0: i32, %arg1: memref<32x256xf32, #tpu.memory_space<vmem>>, %arg2: memref<256x512xbf16, #tpu.memory_space<vmem>>, %arg3: memref<1x512xf32, #tpu.memory_space<vmem>>, %arg4: memref<512x128xbf16, #tpu.memory_space<vmem>>, %arg5: memref<1x128xf32, #tpu.memory_space<vmem>>, %arg6: memref<32x128xf32, #tpu.memory_space<vmem>>) attributes {dimension_semantics = [#tpu.dimension_semantics<parallel>], iteration_bounds = array<i64: 2>, scalar_prefetch = 0 : i64, scratch_operands = 0 : i64, tpu.core_type = #tpu.core_type<tc>, window_params = [{transform_indices = @transform_0, window_bounds = array<i64: 32, 256>}, {pipeline_mode = #tpu.pipeline_mode<synchronous>, transform_indices = @transform_1, window_bounds = array<i64: 256, 512>}, {pipeline_mode = #tpu.pipeline_mode<synchronous>, transform_indices = @transform_2, window_bounds = array<i64: 1, 512>}, {pipeline_mode = #tpu.pipeline_mode<synchronous>, transform_indices = @transform_3, window_bounds = array<i64: 512, 128>}, {pipeline_mode = #tpu.pipeline_mode<synchronous>, transform_indices = @transform_4, window_bounds = array<i64: 1, 128>}, {transform_indices = @transform_5, window_bounds = array<i64: 32, 128>}]} {
    %c0 = arith.constant 0 : index
    %c0_0 = arith.constant 0 : index
    %0 = vector.load %arg1[%c0, %c0_0] : memref<32x256xf32, #tpu.memory_space<vmem>>, vector<32x256xf32>
    %1 = arith.truncf %0 : vector<32x256xf32> to vector<32x256xbf16>
    %c0_1 = arith.constant 0 : index
    %c0_2 = arith.constant 0 : index
    %2 = vector.load %arg2[%c0_1, %c0_2] : memref<256x512xbf16, #tpu.memory_space<vmem>>, vector<256x512xbf16>
    %cst = arith.constant dense<0.000000e+00> : vector<32x512xf32>
    %3 = tpu.matmul %1, %2, %cst {dimension_numbers = #tpu.dot_dimension_numbers<[1], [0], [0], [1], [0, 0, 1, 1], [], []>} : vector<32x256xbf16>, vector<256x512xbf16>, vector<32x512xf32> -> vector<32x512xf32>
    %c0_3 = arith.constant 0 : index
    %c0_4 = arith.constant 0 : index
    %4 = vector.load %arg3[%c0_3, %c0_4] : memref<1x512xf32, #tpu.memory_space<vmem>>, vector<1x512xf32>
    %5 = vector.broadcast %4 : vector<1x512xf32> to vector<32x512xf32>
    %6 = arith.addf %3, %5 : vector<32x512xf32>
    %cst_5 = arith.constant 0.000000e+00 : f32
    %7 = vector.broadcast %cst_5 : f32 to vector<32x512xf32>
    %8 = arith.maximumf %6, %7 : vector<32x512xf32>
    %9 = arith.truncf %8 : vector<32x512xf32> to vector<32x512xbf16>
    %c0_6 = arith.constant 0 : index
    %c0_7 = arith.constant 0 : index
    %10 = vector.load %arg4[%c0_6, %c0_7] : memref<512x128xbf16, #tpu.memory_space<vmem>>, vector<512x128xbf16>
    %cst_8 = arith.constant dense<0.000000e+00> : vector<32x128xf32>
    %11 = tpu.matmul %9, %10, %cst_8 {dimension_numbers = #tpu.dot_dimension_numbers<[1], [0], [0], [1], [0, 0, 1, 1], [], []>} : vector<32x512xbf16>, vector<512x128xbf16>, vector<32x128xf32> -> vector<32x128xf32>
    %c0_9 = arith.constant 0 : index
    %c0_10 = arith.constant 0 : index
    %12 = vector.load %arg5[%c0_9, %c0_10] : memref<1x128xf32, #tpu.memory_space<vmem>>, vector<1x128xf32>
    %13 = vector.broadcast %12 : vector<1x128xf32> to vector<32x128xf32>
    %14 = arith.addf %11, %13 : vector<32x128xf32>
    %c0_11 = arith.constant 0 : index
    %c0_12 = arith.constant 0 : index
    %15 = vector.load %arg6[%c0_11, %c0_12] : memref<32x128xf32, #tpu.memory_space<vmem>>, vector<32x128xf32>
    tpu.vector_store %arg6[%c0_11, %c0_12], %14 {strides = array<i32>} : memref<32x128xf32, #tpu.memory_space<vmem>>, vector<32x128xf32>,
    return
  }
  func.func @transform_0(%arg0: i32) -> (i32, i32) {
    %c0_i32 = arith.constant 0 : i32
    %c0_i32_0 = arith.constant 0 : i32
    return %arg0, %c0_i32 : i32, i32
  }
  func.func @transform_1(%arg0: i32) -> (i32, i32) {
    %c0_i32 = arith.constant 0 : i32
    %c0_i32_0 = arith.constant 0 : i32
    %c0_i32_1 = arith.constant 0 : i32
    return %c0_i32, %c0_i32_0 : i32, i32
  }
  func.func @transform_2(%arg0: i32) -> (i32, i32) {
    %c0_i32 = arith.constant 0 : i32
    %c0_i32_0 = arith.constant 0 : i32
    %c0_i32_1 = arith.constant 0 : i32
    return %c0_i32, %c0_i32_0 : i32, i32
  }
  func.func @transform_3(%arg0: i32) -> (i32, i32) {
    %c0_i32 = arith.constant 0 : i32
    %c0_i32_0 = arith.constant 0 : i32
    %c0_i32_1 = arith.constant 0 : i32
    return %c0_i32, %c0_i32_0 : i32, i32
  }
  func.func @transform_4(%arg0: i32) -> (i32, i32) {
    %c0_i32 = arith.constant 0 : i32
    %c0_i32_0 = arith.constant 0 : i32
    %c0_i32_1 = arith.constant 0 : i32
    return %c0_i32, %c0_i32_0 : i32, i32
  }
  func.func @transform_5(%arg0: i32) -> (i32, i32) {
    %c0_i32 = arith.constant 0 : i32
    %c0_i32_0 = arith.constant 0 : i32
    return %arg0, %c0_i32 : i32, i32
  }
}

</mosaic_0001>

<llo_original>
// kernel: tpu_custom_call.1
$region0: #{tpu_custom_call.1}
  #allocation0 [shape = 'u32[]', space=smem, size = 0x4, offset = 0x4, fixed_abs, tag = 'smem constant byte address 0x4 - core index']
  #allocation1 [shape = 'u32[144,128]{1,0:T(1,128)}', space=vmem, size = 0x12000, scoped, tag = 'internal scratch']
  %s0 = inlined_call_operand.hbm [shape: f32[64,256], index: 0, kind: input, shape index: {}]
  %s1 = inlined_call_operand.hbm [shape: bf16[256,512], index: 1, kind: input, shape index: {}]
  %s2 = inlined_call_operand.hbm [shape: f32[1,512], index: 2, kind: input, shape index: {}]
  %s3 = inlined_call_operand.hbm [shape: bf16[512,128], index: 3, kind: input, shape index: {}]
  %s4 = inlined_call_operand.vmem [shape: f32[1,128], index: 4, kind: input, shape index: {}]
  %s5 = inlined_call_operand.hbm [shape: f32[64,128], index: 5, kind: output, shape index: {}]
  %s6 = sld [smem:[#allocation0]]
  $region69: #{tpu_custom_call.1} parent=0
    _
  %s8 = ssub.s32 1, %s6
  %s9 = scalar_select 0, %s8, %s6
  $region1: #{tpu_custom_call.1} parent=0
    #allocation2 [shape = 'u8[65536]{0}', space=vmem, size = 0x10000, scoped, tag = 'input window, operand 0']
    #allocation3 [shape = 's32[2]{0}', space=sflag, size = 0x8, scoped, tag = 'scoped memory for tpu_custom_call.1']
    #allocation4 [shape = 's32[2]{0}', space=sflag, size = 0x8, scoped, tag = 'scoped memory for tpu_custom_call.1']
    #allocation5 [shape = 'u8[262144]{0}', space=vmem, size = 0x40000, scoped, tag = 'input window, operand 1, single buffered']
    #allocation6 [shape = 's32[1]{0}', space=sflag, size = 0x4, scoped, tag = 'scoped memory for tpu_custom_call.1']
    #allocation7 [shape = 'u8[2048]{0}', space=vmem, size = 0x800, scoped, tag = 'input window, operand 2, single buffered']
    #allocation8 [shape = 'u8[131072]{0}', space=vmem, size = 0x20000, scoped, tag = 'input window, operand 3, single buffered']
    #allocation9 [shape = 's32[1]{0}', space=sflag, size = 0x4, scoped, tag = 'scoped memory for tpu_custom_call.1']
    #allocation10 [shape = 'u8[32768]{0}', space=vmem, size = 0x8000, scoped, tag = 'output window, operand 0']
    %10 = vsyncpa [#allocation3], 0
    %s11 = scalar_lea.sflag [#allocation3], 1
    %12 = vsyncpa %s11, 0
    %13 = vsyncpa [#allocation6], 0
    %14 = vsyncpa [#allocation9], 0
    %15 = vsyncpa [#allocation4], 0
    %s16 = scalar_lea.sflag [#allocation4], 1
    %17 = vsyncpa %s16, 0
    loop: start=0, step=1, limit=4
    $region2: #{tpu_custom_call.1} parent=1 // loop_pre_header
      _
    $region3: #{tpu_custom_call.1} parent=1 // loop_header
      %s19 = sphi 0, %s23
      %p20 = scmp.ge.s32.totalorder %s19, 4
      %s29 = sphi 0, %s31
      %s32 = sphi 0, %s29
      %s33 = sphi 0, %s32
      %s49 = sphi 0, %s33
      %s53 = sphi 0, %s53
      %s55 = sphi 0, %s53
      %s56 = sphi 0, %s55
      %s70 = sphi 0, %s56
      %s74 = sphi 0, %s74
      %s76 = sphi 0, %s74
      %s77 = sphi 0, %s76
      %s91 = sphi 0, %s77
      %s95 = sphi 0, %s95
      %s97 = sphi 0, %s95
      %s98 = sphi 0, %s97
      %s112 = sphi 0, %s98
      %s116 = sphi 0, %s116
      %s118 = sphi 0, %s116
      %s119 = sphi 0, %s118
      %s133 = sphi 0, %s119
      %s139 = sphi 0, %s141
      %s142 = sphi 0, %s139
      %s143 = sphi 0, %s142
      %s159 = sphi 0, %s143
    $region4: #{tpu_custom_call.1} parent=1 // loop_header_branch
      %22 = sbr.rel (%p20) target = $region8
    $region5: #{tpu_custom_call.1} parent=1 // loop_body
      %s24 = ssub.s32 %s19, 1
      %s25 = ssub.s32 %s19, 2
      %s26 = sadd.s32 %s19, 1
      %s27 = ssub.s32 %s19, %s26
      %p28 = scmp.eq.s32.totalorder %s27, 0
      %s30 = sadd.s32 %s29, 1
      %s31 = scalar_select %p28, %s29, %s30
      %p34 = pneg %p28
      %p35 = scmp.eq.s32.totalorder %s19, 1
      %p36 = por %p34, %p35
      %p37 = scmp.ne.s32.totalorder %s29, %s32
      %p38 = scmp.eq.s32.totalorder %s19, 0
      %p39 = por %p37, %p38
      %p40 = scmp.ne.s32.totalorder %s29, %s32
      %p41 = scmp.eq.s32.totalorder %s24, 1
      %p42 = por %p40, %p41
      %p43 = scmp.ne.s32.totalorder %s32, %s33
      %p44 = scmp.eq.s32.totalorder %s24, 0
      %p45 = por %p43, %p44
      %p46 = scmp.ne.s32.totalorder %s32, %s33
      %p47 = scmp.eq.s32.totalorder %s25, 1
      %p48 = por %p46, %p47
      %p50 = scmp.ne.s32.totalorder %s33, %s49
      %p51 = scmp.eq.s32.totalorder %s25, 0
      %p52 = por %p50, %p51
      %s54 = sadd.s32 %s53, 1
      %p57 = scmp.eq.s32.totalorder %s19, 1
      %p58 = scmp.ne.s32.totalorder %s53, %s55
      %p59 = scmp.eq.s32.totalorder %s19, 0
      %p60 = por %p58, %p59
      %p61 = scmp.ne.s32.totalorder %s53, %s55
      %p62 = scmp.eq.s32.totalorder %s24, 1
      %p63 = por %p61, %p62
      %p64 = scmp.ne.s32.totalorder %s55, %s56
      %p65 = scmp.eq.s32.totalorder %s24, 0
      %p66 = por %p64, %p65
      %p67 = scmp.ne.s32.totalorder %s55, %s56
      %p68 = scmp.eq.s32.totalorder %s25, 1
      %p69 = por %p67, %p68
      %p71 = scmp.ne.s32.totalorder %s56, %s70
      %p72 = scmp.eq.s32.totalorder %s25, 0
      %p73 = por %p71, %p72
      %s75 = sadd.s32 %s74, 1
      %p78 = scmp.eq.s32.totalorder %s19, 1
      %p79 = scmp.ne.s32.totalorder %s74, %s76
      %p80 = scmp.eq.s32.totalorder %s19, 0
      %p81 = por %p79, %p80
      %p82 = scmp.ne.s32.totalorder %s74, %s76
      %p83 = scmp.eq.s32.totalorder %s24, 1
      %p84 = por %p82, %p83
      %p85 = scmp.ne.s32.totalorder %s76, %s77
      %p86 = scmp.eq.s32.totalorder %s24, 0
      %p87 = por %p85, %p86
      %p88 = scmp.ne.s32.totalorder %s76, %s77
      %p89 = scmp.eq.s32.totalorder %s25, 1
      %p90 = por %p88, %p89
      %p92 = scmp.ne.s32.totalorder %s77, %s91
      %p93 = scmp.eq.s32.totalorder %s25, 0
      %p94 = por %p92, %p93
      %s96 = sadd.s32 %s95, 1
      %p99 = scmp.eq.s32.totalorder %s19, 1
      %p100 = scmp.ne.s32.totalorder %s95, %s97
      %p101 = scmp.eq.s32.totalorder %s19, 0
      %p102 = por %p100, %p101
      %p103 = scmp.ne.s32.totalorder %s95, %s97
      %p104 = scmp.eq.s32.totalorder %s24, 1
      %p105 = por %p103, %p104
      %p106 = scmp.ne.s32.totalorder %s97, %s98
      %p107 = scmp.eq.s32.totalorder %s24, 0
      %p108 = por %p106, %p107
      %p109 = scmp.ne.s32.totalorder %s97, %s98
      %p110 = scmp.eq.s32.totalorder %s25, 1
      %p111 = por %p109, %p110
      %p113 = scmp.ne.s32.totalorder %s98, %s112
      %p114 = scmp.eq.s32.totalorder %s25, 0
      %p115 = por %p113, %p114
      %s117 = sadd.s32 %s116, 1
      %p120 = scmp.eq.s32.totalorder %s19, 1
      %p121 = scmp.ne.s32.totalorder %s116, %s118
      %p122 = scmp.eq.s32.totalorder %s19, 0
      %p123 = por %p121, %p122
      %p124 = scmp.ne.s32.totalorder %s116, %s118
      %p125 = scmp.eq.s32.totalorder %s24, 1
      %p126 = por %p124, %p125
      %p127 = scmp.ne.s32.totalorder %s118, %s119
      %p128 = scmp.eq.s32.totalorder %s24, 0
      %p129 = por %p127, %p128
      %p130 = scmp.ne.s32.totalorder %s118, %s119
      %p131 = scmp.eq.s32.totalorder %s25, 1
      %p132 = por %p130, %p131
      %p134 = scmp.ne.s32.totalorder %s119, %s133
      %p135 = scmp.eq.s32.totalorder %s25, 0
      %p136 = por %p134, %p135
      %s137 = ssub.s32 %s19, %s26
      %p138 = scmp.eq.s32.totalorder %s137, 0
      %s140 = sadd.s32 %s139, 1
      %s141 = scalar_select %p138, %s139, %s140
      %p144 = pneg %p138
      %p145 = scmp.eq.s32.totalorder %s19, 1
      %p146 = por %p144, %p145
      %p147 = scmp.ne.s32.totalorder %s139, %s142
      %p148 = scmp.eq.s32.totalorder %s19, 0
      %p149 = por %p147, %p148
      %p150 = scmp.ne.s32.totalorder %s139, %s142
      %p151 = scmp.eq.s32.totalorder %s24, 1
      %p152 = por %p150, %p151
      %p153 = scmp.ne.s32.totalorder %s142, %s143
      %p154 = scmp.eq.s32.totalorder %s24, 0
      %p155 = por %p153, %p154
      %p156 = scmp.ne.s32.totalorder %s142, %s143
      %p157 = scmp.eq.s32.totalorder %s25, 1
      %p158 = por %p156, %p157
      %p160 = scmp.ne.s32.totalorder %s143, %s159
      %p161 = scmp.eq.s32.totalorder %s25, 0
      %p162 = por %p160, %p161
      %p163 = scmp.le.s32.totalorder 1, %s19
      %p164 = scmp.lt.s32.totalorder %s19, 3
      %p165 = pnand %p163, %p164
      %p166 = pneg %p165
      // Predicated region
      $region9: #{tpu_custom_call.1} parent=5 // pred_check
        _
      $region10: #{tpu_custom_call.1} parent=5 // pred_check_branch
        %168 = sbr.rel (%p165) target = $region12
      $region11: #{tpu_custom_call.1} parent=5 // pred_region
        %s169 = ssub.s32 %s19, 1
        // Predicated region
        $region13: #{tpu_custom_call.1} parent=11 // pred_check
          %p170 = pneg %p66
        $region14: #{tpu_custom_call.1} parent=11 // pred_check_branch
          %172 = sbr.rel (%p170) target = $region16
        $region15: #{tpu_custom_call.1} parent=11 // pred_region
          %s174 = ssub.s32 8192, 8192
          %175 = vsyncadd [#allocation6], %s174
          %s176 = sshll.u32 [#allocation5], 4
          %s177 = int_to_ptr.vmem [resolvable:$true] %s176
          %182 = dma.hbm_to_vmem [thread:$0]  %s1, 8192, %s177, [#allocation6], 256, 256, 16
        $region16: #{tpu_custom_call.1} parent=11 // pred_fallthru
          _
        // Predicated region
        $region17: #{tpu_custom_call.1} parent=11 // pred_check
          %p183 = pneg %p87
        $region18: #{tpu_custom_call.1} parent=11 // pred_check_branch
          %185 = sbr.rel (%p183) target = $region20
        $region19: #{tpu_custom_call.1} parent=11 // pred_region
          %s187 = ssub.s32 64, 64
          %188 = vsyncadd [#allocation6], %s187
          %s190 = sshll.u32 [#allocation7], 4
          %s191 = int_to_ptr.vmem [resolvable:$true] %s190
          %193 = dma.hbm_to_vmem [thread:$0]  %s2, 64, %s191, [#allocation6]
        $region20: #{tpu_custom_call.1} parent=11 // pred_fallthru
          _
        // Predicated region
        $region21: #{tpu_custom_call.1} parent=11 // pred_check
          %p194 = pneg %p108
        $region22: #{tpu_custom_call.1} parent=11 // pred_check_branch
          %196 = sbr.rel (%p194) target = $region24
        $region23: #{tpu_custom_call.1} parent=11 // pred_region
          %s198 = ssub.s32 4096, 4096
          %199 = vsyncadd [#allocation9], %s198
          %s200 = sshll.u32 [#allocation8], 4
          %s201 = int_to_ptr.vmem [resolvable:$true] %s200
          %206 = dma.hbm_to_vmem [thread:$0]  %s3, 4096, %s201, [#allocation9], 64, 64, 4
        $region24: #{tpu_custom_call.1} parent=11 // pred_fallthru
          _
        // Predicated region
        $region25: #{tpu_custom_call.1} parent=11 // pred_check
          %p207 = pneg %p129
        $region26: #{tpu_custom_call.1} parent=11 // pred_check_branch
          %209 = sbr.rel (%p207) target = $region28
        $region27: #{tpu_custom_call.1} parent=11 // pred_region
          _
        $region28: #{tpu_custom_call.1} parent=11 // pred_fallthru
          _
      $region12: #{tpu_custom_call.1} parent=5 // pred_fallthru
        _
      %p210 = scmp.lt.s32.totalorder %s19, 2
      // Predicated region
      $region29: #{tpu_custom_call.1} parent=5 // pred_check
        %p211 = pneg %p210
      $region30: #{tpu_custom_call.1} parent=5 // pred_check_branch
        %213 = sbr.rel (%p211) target = $region32
      $region31: #{tpu_custom_call.1} parent=5 // pred_region
        // Predicated region
        $region33: #{tpu_custom_call.1} parent=31 // pred_check
          %p214 = pneg %p39
        $region34: #{tpu_custom_call.1} parent=31 // pred_check_branch
          %216 = sbr.rel (%p214) target = $region36
        $region35: #{tpu_custom_call.1} parent=31 // pred_region
          %s217 = sand.u32 %s29, 1
          %s218 = scalar_lea.sflag [#allocation3], %s217
          %s219 = sand.u32 %s29, 1
          %s220 = smul.addr %s219, 64
          %s221 = scalar_lea.vmem [#allocation2], %s220
          %s222 = smul.u32 4, %s19
          %s224 = ssub.s32 1024, 1024
          %225 = vsyncadd %s218, %s224
          %s226 = smul.addr %s222, 2
          %s227 = smul.addr %s226, 128
          %s228 = scalar_lea.hbm %s0, %s227
          %s229 = sshll.u32 %s221, 4
          %s230 = int_to_ptr.vmem [resolvable:$true] %s229
          %235 = dma.hbm_to_vmem [thread:$0]  %s228, 1024, %s230, %s218, 256, 256, 16
        $region36: #{tpu_custom_call.1} parent=31 // pred_fallthru
          _
      $region32: #{tpu_custom_call.1} parent=5 // pred_fallthru
        _
      %p236 = scmp.le.s32.totalorder 1, %s19
      %p237 = scmp.lt.s32.totalorder %s19, 3
      %p238 = pnand %p236, %p237
      %p239 = pneg %p238
      // Predicated region
      $region37: #{tpu_custom_call.1} parent=5 // pred_check
        _
      $region38: #{tpu_custom_call.1} parent=5 // pred_check_branch
        %241 = sbr.rel (%p238) target = $region40
      $region39: #{tpu_custom_call.1} parent=5 // pred_region
        %s242 = ssub.s32 %s19, 1
        %s243 = sand.u32 %s32, 1
        %s244 = scalar_lea.sflag [#allocation3], %s243
        %s245 = sand.u32 %s32, 1
        %s246 = smul.addr %s245, 64
        %s247 = scalar_lea.vmem [#allocation2], %s246
        // Predicated region
        $region41: #{tpu_custom_call.1} parent=39 // pred_check
          %p248 = pneg %p45
        $region42: #{tpu_custom_call.1} parent=39 // pred_check_branch
          %250 = sbr.rel (%p248) target = $region44
        $region43: #{tpu_custom_call.1} parent=39 // pred_region
          %251 = dma.done %s244, 1024
        $region44: #{tpu_custom_call.1} parent=39 // pred_fallthru
          _
        // Predicated region
        $region45: #{tpu_custom_call.1} parent=39 // pred_check
          %p252 = pneg %p66
        $region46: #{tpu_custom_call.1} parent=39 // pred_check_branch
          %254 = sbr.rel (%p252) target = $region48
        $region47: #{tpu_custom_call.1} parent=39 // pred_region
          %255 = dma.done [#allocation6], 8192
        $region48: #{tpu_custom_call.1} parent=39 // pred_fallthru
          _
        // Predicated region
        $region49: #{tpu_custom_call.1} parent=39 // pred_check
          %p256 = pneg %p87
        $region50: #{tpu_custom_call.1} parent=39 // pred_check_branch
          %258 = sbr.rel (%p256) target = $region52
        $region51: #{tpu_custom_call.1} parent=39 // pred_region
          %259 = dma.done [#allocation6], 64
        $region52: #{tpu_custom_call.1} parent=39 // pred_fallthru
          _
        // Predicated region
        $region53: #{tpu_custom_call.1} parent=39 // pred_check
          %p260 = pneg %p108
        $region54: #{tpu_custom_call.1} parent=39 // pred_check_branch
          %262 = sbr.rel (%p260) target = $region56
        $region55: #{tpu_custom_call.1} parent=39 // pred_region
          %263 = dma.done [#allocation9], 4096
        $region56: #{tpu_custom_call.1} parent=39 // pred_fallthru
          _
        %s264 = sand.u32 %s32, 1
        %s265 = scalar_lea.sflag [#allocation3], %s264
        %s266 = sand.u32 %s32, 1
        %s267 = smul.addr %s266, 64
        %s268 = scalar_lea.vmem [#allocation2], %s267
        %p269 = pneg %p45
        %p270 = pneg %p42
        %p271 = pneg %p66
        %p272 = pneg %p63
        %p273 = pneg %p87
        %p274 = pneg %p84
        %p275 = pneg %p108
        %p276 = pneg %p105
        %p277 = pneg %p129
        %p278 = pneg %p126
        %p279 = pneg %p155
        %p280 = pneg %p152
        %s281 = sand.u32 %s142, 1
        %s282 = scalar_lea.sflag [#allocation4], %s281
        %s283 = sand.u32 %s142, 1
        %s284 = smul.addr %s283, 32
        %s285 = scalar_lea.vmem [#allocation10], %s284
        %s286 = smul.u32 4, %s24
        %s287 = smul.u32 4, %s24
        %v289 = vld [vmem:[%s247] sm:$0xff]
        %v290 = vld [vmem:[%s247 + $0x8] sm:$0xff]
        %v291 = vld [vmem:[%s247 + $0x10] sm:$0xff]
        %v292 = vld [vmem:[%s247 + $0x18] sm:$0xff]
        %v293 = vld [vmem:[%s247 + $0x20] sm:$0xff]
        %v294 = vld [vmem:[%s247 + $0x28] sm:$0xff]
        %v295 = vld [vmem:[%s247 + $0x30] sm:$0xff]
        %v296 = vld [vmem:[%s247 + $0x38] sm:$0xff]
        %v297 = vpack.c.bf16 %v291, %v289
        %v298 = vpack.c.bf16 %v292, %v290
        %v299 = vpack.c.bf16 %v295, %v293
        %v300 = vpack.c.bf16 %v296, %v294
        %v301 = vld [vmem:[#allocation5] sm:$0xff]
        %v302 = vld [vmem:[#allocation5 + $0x8] sm:$0xff]
        %v303 = vld [vmem:[#allocation5 + $0x10] sm:$0xff]
        %v304 = vld [vmem:[#allocation5 + $0x18] sm:$0xff]
        %v305 = vld [vmem:[#allocation5 + $0x20] sm:$0xff]
        %v306 = vld [vmem:[#allocation5 + $0x28] sm:$0xff]
        %v307 = vld [vmem:[#allocation5 + $0x30] sm:$0xff]
        %v308 = vld [vmem:[#allocation5 + $0x38] sm:$0xff]
        %v309 = vld [vmem:[#allocation5 + $0x40] sm:$0xff]
        %v310 = vld [vmem:[#allocation5 + $0x48] sm:$0xff]
        %v311 = vld [vmem:[#allocation5 + $0x50] sm:$0xff]
        %v312 = vld [vmem:[#allocation5 + $0x58] sm:$0xff]
        %v313 = vld [vmem:[#allocation5 + $0x60] sm:$0xff]
        %v314 = vld [vmem:[#allocation5 + $0x68] sm:$0xff]
        %v315 = vld [vmem:[#allocation5 + $0x70] sm:$0xff]
        %v316 = vld [vmem:[#allocation5 + $0x78] sm:$0xff]
        %v317 = vld [vmem:[#allocation5 + $0x80] sm:$0xff]
        %v318 = vld [vmem:[#allocation5 + $0x88] sm:$0xff]
        %v319 = vld [vmem:[#allocation5 + $0x90] sm:$0xff]
        %v320 = vld [vmem:[#allocation5 + $0x98] sm:$0xff]
        %v321 = vld [vmem:[#allocation5 + $0xa0] sm:$0xff]
        %v322 = vld [vmem:[#allocation5 + $0xa8] sm:$0xff]
        %v323 = vld [vmem:[#allocation5 + $0xb0] sm:$0xff]
        %v324 = vld [vmem:[#allocation5 + $0xb8] sm:$0xff]
        %v325 = vld [vmem:[#allocation5 + $0xc0] sm:$0xff]
        %v326 = vld [vmem:[#allocation5 + $0xc8] sm:$0xff]
        %v327 = vld [vmem:[#allocation5 + $0xd0] sm:$0xff]
        %v328 = vld [vmem:[#allocation5 + $0xd8] sm:$0xff]
        %v329 = vld [vmem:[#allocation5 + $0xe0] sm:$0xff]
        %v330 = vld [vmem:[#allocation5 + $0xe8] sm:$0xff]
        %v331 = vld [vmem:[#allocation5 + $0xf0] sm:$0xff]
        %v332 = vld [vmem:[#allocation5 + $0xf8] sm:$0xff]
        %v333 = vld [vmem:[#allocation5 + $0x100] sm:$0xff]
        %v334 = vld [vmem:[#allocation5 + $0x108] sm:$0xff]
        %v335 = vld [vmem:[#allocation5 + $0x110] sm:$0xff]
        %v336 = vld [vmem:[#allocation5 + $0x118] sm:$0xff]
        %v337 = vld [vmem:[#allocation5 + $0x120] sm:$0xff]
        %v338 = vld [vmem:[#allocation5 + $0x128] sm:$0xff]
        %v339 = vld [vmem:[#allocation5 + $0x130] sm:$0xff]
        %v340 = vld [vmem:[#allocation5 + $0x138] sm:$0xff]
        %v341 = vld [vmem:[#allocation5 + $0x140] sm:$0xff]
        %v342 = vld [vmem:[#allocation5 + $0x148] sm:$0xff]
        %v343 = vld [vmem:[#allocation5 + $0x150] sm:$0xff]
        %v344 = vld [vmem:[#allocation5 + $0x158] sm:$0xff]
        %v345 = vld [vmem:[#allocation5 + $0x160] sm:$0xff]
        %v346 = vld [vmem:[#allocation5 + $0x168] sm:$0xff]
        %v347 = vld [vmem:[#allocation5 + $0x170] sm:$0xff]
        %v348 = vld [vmem:[#allocation5 + $0x178] sm:$0xff]
        %v349 = vld [vmem:[#allocation5 + $0x180] sm:$0xff]
        %v350 = vld [vmem:[#allocation5 + $0x188] sm:$0xff]
        %v351 = vld [vmem:[#allocation5 + $0x190] sm:$0xff]
        %v352 = vld [vmem:[#allocation5 + $0x198] sm:$0xff]
        %v353 = vld [vmem:[#allocation5 + $0x1a0] sm:$0xff]
        %v354 = vld [vmem:[#allocation5 + $0x1a8] sm:$0xff]
        %v355 = vld [vmem:[#allocation5 + $0x1b0] sm:$0xff]
        %v356 = vld [vmem:[#allocation5 + $0x1b8] sm:$0xff]
        %v357 = vld [vmem:[#allocation5 + $0x1c0] sm:$0xff]
        %v358 = vld [vmem:[#allocation5 + $0x1c8] sm:$0xff]
        %v359 = vld [vmem:[#allocation5 + $0x1d0] sm:$0xff]
        %v360 = vld [vmem:[#allocation5 + $0x1d8] sm:$0xff]
        %v361 = vld [vmem:[#allocation5 + $0x1e0] sm:$0xff]
        %v362 = vld [vmem:[#allocation5 + $0x1e8] sm:$0xff]
        %v363 = vld [vmem:[#allocation5 + $0x1f0] sm:$0xff]
        %v364 = vld [vmem:[#allocation5 + $0x1f8] sm:$0xff]
        %v365 = vld [vmem:[#allocation7] sm:$0xf]
        %v367 = vlaneseq
        %v368 = vshrl.u32 %v367, 7
        %v369 = vsub.s32 0, %v368
        %v370 = vrot.slane %v365, %v369
        %v371 = vlaneseq
        %v372 = vshrl.u32 %v371, 7
        %v373 = vsub.s32 1, %v372
        %v374 = vrot.slane %v365, %v373
        %v375 = vlaneseq
        %v376 = vshrl.u32 %v375, 7
        %v377 = vsub.s32 2, %v376
        %v378 = vrot.slane %v365, %v377
        %v379 = vlaneseq
        %v380 = vshrl.u32 %v379, 7
        %v381 = vsub.s32 3, %v380
        %v382 = vrot.slane %v365, %v381
        %v451 = vunpack.c.l.b16 %v301
        %v452 = vunpack.c.h.b16 %v301
        %v453 = vunpack.c.l.b16 %v302
        %v454 = vunpack.c.h.b16 %v302
        %v455 = vunpack.c.l.b16 %v303
        %v456 = vunpack.c.h.b16 %v303
        %v457 = vunpack.c.l.b16 %v304
        %v458 = vunpack.c.h.b16 %v304
        %v459 = vunpack.c.l.b16 %v305
        %v460 = vunpack.c.h.b16 %v305
        %v461 = vunpack.c.l.b16 %v306
        %v462 = vunpack.c.h.b16 %v306
        %v463 = vunpack.c.l.b16 %v307
        %v464 = vunpack.c.h.b16 %v307
        %v465 = vunpack.c.l.b16 %v308
        %v466 = vunpack.c.h.b16 %v308
        %v467 = vunpack.c.l.b16 %v309
        %v468 = vunpack.c.h.b16 %v309
        %v469 = vunpack.c.l.b16 %v310
        %v470 = vunpack.c.h.b16 %v310
        %v471 = vunpack.c.l.b16 %v311
        %v472 = vunpack.c.h.b16 %v311
        %v473 = vunpack.c.l.b16 %v312
        %v474 = vunpack.c.h.b16 %v312
        %v475 = vunpack.c.l.b16 %v313
        %v476 = vunpack.c.h.b16 %v313
        %v477 = vunpack.c.l.b16 %v314
        %v478 = vunpack.c.h.b16 %v314
        %v479 = vunpack.c.l.b16 %v315
        %v480 = vunpack.c.h.b16 %v315
        %v481 = vunpack.c.l.b16 %v316
        %v482 = vunpack.c.h.b16 %v316
        %v483 = vunpack.c.l.b16 %v317
        %v484 = vunpack.c.h.b16 %v317
        %v485 = vunpack.c.l.b16 %v318
        %v486 = vunpack.c.h.b16 %v318
        %v487 = vunpack.c.l.b16 %v319
        %v488 = vunpack.c.h.b16 %v319
        %v489 = vunpack.c.l.b16 %v320
        %v490 = vunpack.c.h.b16 %v320
        %v491 = vunpack.c.l.b16 %v321
        %v492 = vunpack.c.h.b16 %v321
        %v493 = vunpack.c.l.b16 %v322
        %v494 = vunpack.c.h.b16 %v322
        %v495 = vunpack.c.l.b16 %v323
        %v496 = vunpack.c.h.b16 %v323
        %v497 = vunpack.c.l.b16 %v324
        %v498 = vunpack.c.h.b16 %v324
        %v499 = vunpack.c.l.b16 %v325
        %v500 = vunpack.c.h.b16 %v325
        %v501 = vunpack.c.l.b16 %v326
        %v502 = vunpack.c.h.b16 %v326
        %v503 = vunpack.c.l.b16 %v327
        %v504 = vunpack.c.h.b16 %v327
        %v505 = vunpack.c.l.b16 %v328
        %v506 = vunpack.c.h.b16 %v328
        %v507 = vunpack.c.l.b16 %v329
        %v508 = vunpack.c.h.b16 %v329
        %v509 = vunpack.c.l.b16 %v330
        %v510 = vunpack.c.h.b16 %v330
        %v511 = vunpack.c.l.b16 %v331
        %v512 = vunpack.c.h.b16 %v331
        %v513 = vunpack.c.l.b16 %v332
        %v514 = vunpack.c.h.b16 %v332
        %v515 = vunpack.c.l.b16 %v333
        %v516 = vunpack.c.h.b16 %v333
        %v517 = vunpack.c.l.b16 %v334
        %v518 = vunpack.c.h.b16 %v334
        %v519 = vunpack.c.l.b16 %v335
        %v520 = vunpack.c.h.b16 %v335
        %v521 = vunpack.c.l.b16 %v336
        %v522 = vunpack.c.h.b16 %v336
        %v523 = vunpack.c.l.b16 %v337
        %v524 = vunpack.c.h.b16 %v337
        %v525 = vunpack.c.l.b16 %v338
        %v526 = vunpack.c.h.b16 %v338
        %v527 = vunpack.c.l.b16 %v339
        %v528 = vunpack.c.h.b16 %v339
        %v529 = vunpack.c.l.b16 %v340
        %v530 = vunpack.c.h.b16 %v340
        %v531 = vunpack.c.l.b16 %v341
        %v532 = vunpack.c.h.b16 %v341
        %v533 = vunpack.c.l.b16 %v342
        %v534 = vunpack.c.h.b16 %v342
        %v535 = vunpack.c.l.b16 %v343
        %v536 = vunpack.c.h.b16 %v343
        %v537 = vunpack.c.l.b16 %v344
        %v538 = vunpack.c.h.b16 %v344
        %v539 = vunpack.c.l.b16 %v345
        %v540 = vunpack.c.h.b16 %v345
        %v541 = vunpack.c.l.b16 %v346
        %v542 = vunpack.c.h.b16 %v346
        %v543 = vunpack.c.l.b16 %v347
        %v544 = vunpack.c.h.b16 %v347
        %v545 = vunpack.c.l.b16 %v348
        %v546 = vunpack.c.h.b16 %v348
        %v547 = vunpack.c.l.b16 %v349
        %v548 = vunpack.c.h.b16 %v349
        %v549 = vunpack.c.l.b16 %v350
        %v550 = vunpack.c.h.b16 %v350
        %v551 = vunpack.c.l.b16 %v351
        %v552 = vunpack.c.h.b16 %v351
        %v553 = vunpack.c.l.b16 %v352
        %v554 = vunpack.c.h.b16 %v352
        %v555 = vunpack.c.l.b16 %v353
        %v556 = vunpack.c.h.b16 %v353
        %v557 = vunpack.c.l.b16 %v354
        %v558 = vunpack.c.h.b16 %v354
        %v559 = vunpack.c.l.b16 %v355
        %v560 = vunpack.c.h.b16 %v355
        %v561 = vunpack.c.l.b16 %v356
        %v562 = vunpack.c.h.b16 %v356
        %v563 = vunpack.c.l.b16 %v357
        %v564 = vunpack.c.h.b16 %v357
        %v565 = vunpack.c.l.b16 %v358
        %v566 = vunpack.c.h.b16 %v358
        %v567 = vunpack.c.l.b16 %v359
        %v568 = vunpack.c.h.b16 %v359
        %v569 = vunpack.c.l.b16 %v360
        %v570 = vunpack.c.h.b16 %v360
        %v571 = vunpack.c.l.b16 %v361
        %v572 = vunpack.c.h.b16 %v361
        %v573 = vunpack.c.l.b16 %v362
        %v574 = vunpack.c.h.b16 %v362
        %v575 = vunpack.c.l.b16 %v363
        %v576 = vunpack.c.h.b16 %v363
        %v577 = vunpack.c.l.b16 %v364
        %v578 = vunpack.c.h.b16 %v364
        %v579 = vpack.c.b16 %v455, %v451
        %v580 = vpack.c.b16 %v456, %v452
        %v581 = vpack.c.b16 %v457, %v453
        %v582 = vpack.c.b16 %v458, %v454
        %v583 = vpack.c.b16 %v463, %v459
        %v584 = vpack.c.b16 %v464, %v460
        %v585 = vpack.c.b16 %v465, %v461
        %v586 = vpack.c.b16 %v466, %v462
        %v587 = vpack.c.b16 %v471, %v467
        %v588 = vpack.c.b16 %v472, %v468
        %v589 = vpack.c.b16 %v473, %v469
        %v590 = vpack.c.b16 %v474, %v470
        %v591 = vpack.c.b16 %v479, %v475
        %v592 = vpack.c.b16 %v480, %v476
        %v593 = vpack.c.b16 %v481, %v477
        %v594 = vpack.c.b16 %v482, %v478
        %v595 = vpack.c.b16 %v487, %v483
        %v596 = vpack.c.b16 %v488, %v484
        %v597 = vpack.c.b16 %v489, %v485
        %v598 = vpack.c.b16 %v490, %v486
        %v599 = vpack.c.b16 %v495, %v491
        %v600 = vpack.c.b16 %v496, %v492
        %v601 = vpack.c.b16 %v497, %v493
        %v602 = vpack.c.b16 %v498, %v494
        %v603 = vpack.c.b16 %v503, %v499
        %v604 = vpack.c.b16 %v504, %v500
        %v605 = vpack.c.b16 %v505, %v501
        %v606 = vpack.c.b16 %v506, %v502
        %v607 = vpack.c.b16 %v511, %v507
        %v608 = vpack.c.b16 %v512, %v508
        %v609 = vpack.c.b16 %v513, %v509
        %v610 = vpack.c.b16 %v514, %v510
        %v611 = vpack.c.b16 %v519, %v515
        %v612 = vpack.c.b16 %v520, %v516
        %v613 = vpack.c.b16 %v521, %v517
        %v614 = vpack.c.b16 %v522, %v518
        %v615 = vpack.c.b16 %v527, %v523
        %v616 = vpack.c.b16 %v528, %v524
        %v617 = vpack.c.b16 %v529, %v525
        %v618 = vpack.c.b16 %v530, %v526
        %v619 = vpack.c.b16 %v535, %v531
        %v620 = vpack.c.b16 %v536, %v532
        %v621 = vpack.c.b16 %v537, %v533
        %v622 = vpack.c.b16 %v538, %v534
        %v623 = vpack.c.b16 %v543, %v539
        %v624 = vpack.c.b16 %v544, %v540
        %v625 = vpack.c.b16 %v545, %v541
        %v626 = vpack.c.b16 %v546, %v542
        %v627 = vpack.c.b16 %v551, %v547
        %v628 = vpack.c.b16 %v552, %v548
        %v629 = vpack.c.b16 %v553, %v549
        %v630 = vpack.c.b16 %v554, %v550
        %v631 = vpack.c.b16 %v559, %v555
        %v632 = vpack.c.b16 %v560, %v556
        %v633 = vpack.c.b16 %v561, %v557
        %v634 = vpack.c.b16 %v562, %v558
        %v635 = vpack.c.b16 %v567, %v563
        %v636 = vpack.c.b16 %v568, %v564
        %v637 = vpack.c.b16 %v569, %v565
        %v638 = vpack.c.b16 %v570, %v566
        %v639 = vpack.c.b16 %v575, %v571
        %v640 = vpack.c.b16 %v576, %v572
        %v641 = vpack.c.b16 %v577, %v573
        %v642 = vpack.c.b16 %v578, %v574
        %707 = vmatprep.subr.bf16.mxu0 %v608
        %708 = vmatpush1.bf16.msra.mxu0 %v607
        %709 = vmatprep.subr.bf16.mxu0 %v604
        %710 = vmatpush1.bf16.msra.mxu0 %v603
        %711 = vmatprep.subr.bf16.mxu0 %v600
        %712 = vmatpush1.bf16.msra.mxu0 %v599
        %713 = vmatprep.subr.bf16.mxu0 %v596
        %714 = vmatpush1.bf16.msra.mxu0 %v595
        %715 = vmatprep.subr.bf16.mxu0 %v592
        %716 = vmatpush1.bf16.msra.mxu0 %v591
        %717 = vmatprep.subr.bf16.mxu0 %v588
        %718 = vmatpush1.bf16.msra.mxu0 %v587
        %719 = vmatprep.subr.bf16.mxu0 %v584
        %720 = vmatpush1.bf16.msra.mxu0 %v583
        %721 = vmatprep.subr.bf16.mxu0 %v580
        %722 = vmatpush1.bf16.msra.mxu0 %v579
        %723 = vmatprep.subr.bf16.mxu0 %v640
        %724 = vmatpush2.bf16.msra.mxu0 %v639
        %725 = vmatprep.subr.bf16.mxu0 %v636
        %726 = vmatpush2.bf16.msra.mxu0 %v635
        %727 = vmatprep.subr.bf16.mxu0 %v632
        %728 = vmatpush2.bf16.msra.mxu0 %v631
        %729 = vmatprep.subr.bf16.mxu0 %v628
        %730 = vmatpush2.bf16.msra.mxu0 %v627
        %731 = vmatprep.subr.bf16.mxu0 %v624
        %732 = vmatpush2.bf16.msra.mxu0 %v623
        %733 = vmatprep.subr.bf16.mxu0 %v620
        %734 = vmatpush2.bf16.msra.mxu0 %v619
        %735 = vmatprep.subr.bf16.mxu0 %v616
        %736 = vmatpush2.bf16.msra.mxu0 %v615
        %737 = vmatprep.subr.bf16.mxu0 %v612
        %738 = vmatpush2.bf16.msra.mxu0 %v611
        %739 = vmatprep.mubr.bf16.mxu0 %v298
        %740 = vmatmul.mubr.bf16.gmra.mxu0 %v297
        %v741 = vpop.f32.mrf.mxu0
        %v742 = vadd.f32 %v370, %v741
        %v743 = vpop.f32.mrf.mxu0
        %v744 = vadd.f32 %v374, %v743
        %v745 = vpop.f32.mrf.mxu0
        %v746 = vadd.f32 %v370, %v745
        %v747 = vpop.f32.mrf.mxu0
        %v748 = vadd.f32 %v374, %v747
        %749 = vmatprep.mubr.bf16.mxu0 %v300
        %750 = vmatmul.mubr.bf16.gmra.mxu0 %v299
        %v751 = vpop.f32.mrf.mxu0
        %v752 = vadd.f32 %v370, %v751
        %v753 = vpop.f32.mrf.mxu0
        %v754 = vadd.f32 %v374, %v753
        %v755 = vpop.f32.mrf.mxu0
        %v756 = vadd.f32 %v370, %v755
        %v757 = vpop.f32.mrf.mxu0
        %v758 = vadd.f32 %v374, %v757
        %759 = vdwg.mxu0
        %760 = vmatprep.subr.bf16.mxu0 %v610
        %761 = vmatpush1.bf16.msra.mxu0 %v609
        %762 = vmatprep.subr.bf16.mxu0 %v606
        %763 = vmatpush1.bf16.msra.mxu0 %v605
        %764 = vmatprep.subr.bf16.mxu0 %v602
        %765 = vmatpush1.bf16.msra.mxu0 %v601
        %766 = vmatprep.subr.bf16.mxu0 %v598
        %767 = vmatpush1.bf16.msra.mxu0 %v597
        %768 = vmatprep.subr.bf16.mxu0 %v594
        %769 = vmatpush1.bf16.msra.mxu0 %v593
        %770 = vmatprep.subr.bf16.mxu0 %v590
        %771 = vmatpush1.bf16.msra.mxu0 %v589
        %772 = vmatprep.subr.bf16.mxu0 %v586
        %773 = vmatpush1.bf16.msra.mxu0 %v585
        %774 = vmatprep.subr.bf16.mxu0 %v582
        %775 = vmatpush1.bf16.msra.mxu0 %v581
        %776 = vmatprep.subr.bf16.mxu0 %v642
        %777 = vmatpush2.bf16.msra.mxu0 %v641
        %778 = vmatprep.subr.bf16.mxu0 %v638
        %779 = vmatpush2.bf16.msra.mxu0 %v637
        %780 = vmatprep.subr.bf16.mxu0 %v634
        %781 = vmatpush2.bf16.msra.mxu0 %v633
        %782 = vmatprep.subr.bf16.mxu0 %v630
        %783 = vmatpush2.bf16.msra.mxu0 %v629
        %784 = vmatprep.subr.bf16.mxu0 %v626
        %785 = vmatpush2.bf16.msra.mxu0 %v625
        %786 = vmatprep.subr.bf16.mxu0 %v622
        %787 = vmatpush2.bf16.msra.mxu0 %v621
        %788 = vmatprep.subr.bf16.mxu0 %v618
        %789 = vmatpush2.bf16.msra.mxu0 %v617
        %790 = vmatprep.subr.bf16.mxu0 %v614
        %791 = vmatpush2.bf16.msra.mxu0 %v613
        %792 = vmatprep.mubr.bf16.mxu0 %v298
        %793 = vmatmul.mubr.bf16.gmra.mxu0 %v297
        %v794 = vpop.f32.mrf.mxu0
        %v795 = vadd.f32 %v378, %v794
        %v796 = vpop.f32.mrf.mxu0
        %v797 = vadd.f32 %v382, %v796
        %v798 = vpop.f32.mrf.mxu0
        %v799 = vadd.f32 %v378, %v798
        %v800 = vpop.f32.mrf.mxu0
        %v801 = vadd.f32 %v382, %v800
        %802 = vmatprep.mubr.bf16.mxu0 %v300
        %803 = vmatmul.mubr.bf16.gmra.mxu0 %v299
        %v804 = vpop.f32.mrf.mxu0
        %v805 = vadd.f32 %v378, %v804
        %v806 = vpop.f32.mrf.mxu0
        %v807 = vadd.f32 %v382, %v806
        %v808 = vpop.f32.mrf.mxu0
        %v809 = vadd.f32 %v378, %v808
        %v810 = vpop.f32.mrf.mxu0
        %v811 = vadd.f32 %v382, %v810
        %812 = vdwg.mxu0
        %v813 = vmax.f32 %v742, 0.0
        %v814 = vmax.f32 %v744, 0.0
        %v815 = vmax.f32 %v795, 0.0
        %v816 = vmax.f32 %v797, 0.0
        %v817 = vmax.f32 %v746, 0.0
        %v818 = vmax.f32 %v748, 0.0
        %v819 = vmax.f32 %v799, 0.0
        %v820 = vmax.f32 %v801, 0.0
        %v821 = vmax.f32 %v752, 0.0
        %v822 = vmax.f32 %v754, 0.0
        %v823 = vmax.f32 %v805, 0.0
        %v824 = vmax.f32 %v807, 0.0
        %v825 = vmax.f32 %v756, 0.0
        %v826 = vmax.f32 %v758, 0.0
        %v827 = vmax.f32 %v809, 0.0
        %v828 = vmax.f32 %v811, 0.0
        %v829 = vpack.c.bf16 %v817, %v813
        %v830 = vpack.c.bf16 %v818, %v814
        %v831 = vpack.c.bf16 %v819, %v815
        %v832 = vpack.c.bf16 %v820, %v816
        %v833 = vpack.c.bf16 %v825, %v821
        %v834 = vpack.c.bf16 %v826, %v822
        %v835 = vpack.c.bf16 %v827, %v823
        %v836 = vpack.c.bf16 %v828, %v824
        %v837 = vld [vmem:[#allocation8] sm:$0xf]
        %v838 = vld [vmem:[#allocation8 + $0x4] sm:$0xf]
        %v839 = vld [vmem:[#allocation8 + $0x8] sm:$0xf]
        %v840 = vld [vmem:[#allocation8 + $0xc] sm:$0xf]
        %v841 = vld [vmem:[#allocation8 + $0x10] sm:$0xf]
        %v842 = vld [vmem:[#allocation8 + $0x14] sm:$0xf]
        %v843 = vld [vmem:[#allocation8 + $0x18] sm:$0xf]
        %v844 = vld [vmem:[#allocation8 + $0x1c] sm:$0xf]
        %v845 = vld [vmem:[#allocation8 + $0x20] sm:$0xf]
        %v846 = vld [vmem:[#allocation8 + $0x24] sm:$0xf]
        %v847 = vld [vmem:[#allocation8 + $0x28] sm:$0xf]
        %v848 = vld [vmem:[#allocation8 + $0x2c] sm:$0xf]
        %v849 = vld [vmem:[#allocation8 + $0x30] sm:$0xf]
        %v850 = vld [vmem:[#allocation8 + $0x34] sm:$0xf]
        %v851 = vld [vmem:[#allocation8 + $0x38] sm:$0xf]
        %v852 = vld [vmem:[#allocation8 + $0x3c] sm:$0xf]
        %v853 = vld [vmem:[#allocation8 + $0x40] sm:$0xf]
        %v854 = vld [vmem:[#allocation8 + $0x44] sm:$0xf]
        %v855 = vld [vmem:[#allocation8 + $0x48] sm:$0xf]
        %v856 = vld [vmem:[#allocation8 + $0x4c] sm:$0xf]
        %v857 = vld [vmem:[#allocation8 + $0x50] sm:$0xf]
        %v858 = vld [vmem:[#allocation8 + $0x54] sm:$0xf]
        %v859 = vld [vmem:[#allocation8 + $0x58] sm:$0xf]
        %v860 = vld [vmem:[#allocation8 + $0x5c] sm:$0xf]
        %v861 = vld [vmem:[#allocation8 + $0x60] sm:$0xf]
        %v862 = vld [vmem:[#allocation8 + $0x64] sm:$0xf]
        %v863 = vld [vmem:[#allocation8 + $0x68] sm:$0xf]
        %v864 = vld [vmem:[#allocation8 + $0x6c] sm:$0xf]
        %v865 = vld [vmem:[#allocation8 + $0x70] sm:$0xf]
        %v866 = vld [vmem:[#allocation8 + $0x74] sm:$0xf]
        %v867 = vld [vmem:[#allocation8 + $0x78] sm:$0xf]
        %v868 = vld [vmem:[#allocation8 + $0x7c] sm:$0xf]
        %v869 = vld [vmem:[#allocation8 + $0x80] sm:$0xf]
        %v870 = vld [vmem:[#allocation8 + $0x84] sm:$0xf]
        %v871 = vld [vmem:[#allocation8 + $0x88] sm:$0xf]
        %v872 = vld [vmem:[#allocation8 + $0x8c] sm:$0xf]
        %v873 = vld [vmem:[#allocation8 + $0x90] sm:$0xf]
        %v874 = vld [vmem:[#allocation8 + $0x94] sm:$0xf]
        %v875 = vld [vmem:[#allocation8 + $0x98] sm:$0xf]
        %v876 = vld [vmem:[#allocation8 + $0x9c] sm:$0xf]
        %v877 = vld [vmem:[#allocation8 + $0xa0] sm:$0xf]
        %v878 = vld [vmem:[#allocation8 + $0xa4] sm:$0xf]
        %v879 = vld [vmem:[#allocation8 + $0xa8] sm:$0xf]
        %v880 = vld [vmem:[#allocation8 + $0xac] sm:$0xf]
        %v881 = vld [vmem:[#allocation8 + $0xb0] sm:$0xf]
        %v882 = vld [vmem:[#allocation8 + $0xb4] sm:$0xf]
        %v883 = vld [vmem:[#allocation8 + $0xb8] sm:$0xf]
        %v884 = vld [vmem:[#allocation8 + $0xbc] sm:$0xf]
        %v885 = vld [vmem:[#allocation8 + $0xc0] sm:$0xf]
        %v886 = vld [vmem:[#allocation8 + $0xc4] sm:$0xf]
        %v887 = vld [vmem:[#allocation8 + $0xc8] sm:$0xf]
        %v888 = vld [vmem:[#allocation8 + $0xcc] sm:$0xf]
        %v889 = vld [vmem:[#allocation8 + $0xd0] sm:$0xf]
        %v890 = vld [vmem:[#allocation8 + $0xd4] sm:$0xf]
        %v891 = vld [vmem:[#allocation8 + $0xd8] sm:$0xf]
        %v892 = vld [vmem:[#allocation8 + $0xdc] sm:$0xf]
        %v893 = vld [vmem:[#allocation8 + $0xe0] sm:$0xf]
        %v894 = vld [vmem:[#allocation8 + $0xe4] sm:$0xf]
        %v895 = vld [vmem:[#allocation8 + $0xe8] sm:$0xf]
        %v896 = vld [vmem:[#allocation8 + $0xec] sm:$0xf]
        %v897 = vld [vmem:[#allocation8 + $0xf0] sm:$0xf]
        %v898 = vld [vmem:[#allocation8 + $0xf4] sm:$0xf]
        %v899 = vld [vmem:[#allocation8 + $0xf8] sm:$0xf]
        %v900 = vld [vmem:[#allocation8 + $0xfc] sm:$0xf]
        %v901 = vld [vmem:[%s4] sm:$0x1]
        %v903 = vlaneseq
        %v904 = vshrl.u32 %v903, 7
        %v905 = vsub.s32 0, %v904
        %v906 = vrot.slane %v901, %v905
        %v972 = vunpack.c.l.b16 %v837
        %v973 = vunpack.c.l.b16 %v838
        %v974 = vunpack.c.l.b16 %v839
        %v975 = vunpack.c.l.b16 %v840
        %v976 = vunpack.c.l.b16 %v841
        %v977 = vunpack.c.l.b16 %v842
        %v978 = vunpack.c.l.b16 %v843
        %v979 = vunpack.c.l.b16 %v844
        %v980 = vunpack.c.l.b16 %v845
        %v981 = vunpack.c.l.b16 %v846
        %v982 = vunpack.c.l.b16 %v847
        %v983 = vunpack.c.l.b16 %v848
        %v984 = vunpack.c.l.b16 %v849
        %v985 = vunpack.c.l.b16 %v850
        %v986 = vunpack.c.l.b16 %v851
        %v987 = vunpack.c.l.b16 %v852
        %v988 = vunpack.c.l.b16 %v853
        %v989 = vunpack.c.l.b16 %v854
        %v990 = vunpack.c.l.b16 %v855
        %v991 = vunpack.c.l.b16 %v856
        %v992 = vunpack.c.l.b16 %v857
        %v993 = vunpack.c.l.b16 %v858
        %v994 = vunpack.c.l.b16 %v859
        %v995 = vunpack.c.l.b16 %v860
        %v996 = vunpack.c.l.b16 %v861
        %v997 = vunpack.c.l.b16 %v862
        %v998 = vunpack.c.l.b16 %v863
        %v999 = vunpack.c.l.b16 %v864
        %v1000 = vunpack.c.l.b16 %v865
        %v1001 = vunpack.c.l.b16 %v866
        %v1002 = vunpack.c.l.b16 %v867
        %v1003 = vunpack.c.l.b16 %v868
        %v1004 = vunpack.c.l.b16 %v869
        %v1005 = vunpack.c.l.b16 %v870
        %v1006 = vunpack.c.l.b16 %v871
        %v1007 = vunpack.c.l.b16 %v872
        %v1008 = vunpack.c.l.b16 %v873
        %v1009 = vunpack.c.l.b16 %v874
        %v1010 = vunpack.c.l.b16 %v875
        %v1011 = vunpack.c.l.b16 %v876
        %v1012 = vunpack.c.l.b16 %v877
        %v1013 = vunpack.c.l.b16 %v878
        %v1014 = vunpack.c.l.b16 %v879
        %v1015 = vunpack.c.l.b16 %v880
        %v1016 = vunpack.c.l.b16 %v881
        %v1017 = vunpack.c.l.b16 %v882
        %v1018 = vunpack.c.l.b16 %v883
        %v1019 = vunpack.c.l.b16 %v884
        %v1020 = vunpack.c.l.b16 %v885
        %v1021 = vunpack.c.l.b16 %v886
        %v1022 = vunpack.c.l.b16 %v887
        %v1023 = vunpack.c.l.b16 %v888
        %v1024 = vunpack.c.l.b16 %v889
        %v1025 = vunpack.c.l.b16 %v890
        %v1026 = vunpack.c.l.b16 %v891
        %v1027 = vunpack.c.l.b16 %v892
        %v1028 = vunpack.c.l.b16 %v893
        %v1029 = vunpack.c.l.b16 %v894
        %v1030 = vunpack.c.l.b16 %v895
        %v1031 = vunpack.c.l.b16 %v896
        %v1032 = vunpack.c.l.b16 %v897
        %v1033 = vunpack.c.l.b16 %v898
        %v1034 = vunpack.c.l.b16 %v899
        %v1035 = vunpack.c.l.b16 %v900
        %v1036 = vpack.c.b16 %v973, %v972
        %v1037 = vpack.c.b16 %v975, %v974
        %v1038 = vpack.c.b16 %v977, %v976
        %v1039 = vpack.c.b16 %v979, %v978
        %v1040 = vpack.c.b16 %v981, %v980
        %v1041 = vpack.c.b16 %v983, %v982
        %v1042 = vpack.c.b16 %v985, %v984
        %v1043 = vpack.c.b16 %v987, %v986
        %v1044 = vpack.c.b16 %v989, %v988
        %v1045 = vpack.c.b16 %v991, %v990
        %v1046 = vpack.c.b16 %v993, %v992
        %v1047 = vpack.c.b16 %v995, %v994
        %v1048 = vpack.c.b16 %v997, %v996
        %v1049 = vpack.c.b16 %v999, %v998
        %v1050 = vpack.c.b16 %v1001, %v1000
        %v1051 = vpack.c.b16 %v1003, %v1002
        %v1052 = vpack.c.b16 %v1005, %v1004
        %v1053 = vpack.c.b16 %v1007, %v1006
        %v1054 = vpack.c.b16 %v1009, %v1008
        %v1055 = vpack.c.b16 %v1011, %v1010
        %v1056 = vpack.c.b16 %v1013, %v1012
        %v1057 = vpack.c.b16 %v1015, %v1014
        %v1058 = vpack.c.b16 %v1017, %v1016
        %v1059 = vpack.c.b16 %v1019, %v1018
        %v1060 = vpack.c.b16 %v1021, %v1020
        %v1061 = vpack.c.b16 %v1023, %v1022
        %v1062 = vpack.c.b16 %v1025, %v1024
        %v1063 = vpack.c.b16 %v1027, %v1026
        %v1064 = vpack.c.b16 %v1029, %v1028
        %v1065 = vpack.c.b16 %v1031, %v1030
        %v1066 = vpack.c.b16 %v1033, %v1032
        %v1067 = vpack.c.b16 %v1035, %v1034
        %1100 = vmatprep.subr.bf16.mxu0 0
        %1101 = vmatpush1.bf16.msra.mxu0 %v1043
        %1102 = vmatprep.subr.bf16.mxu0 0
        %1103 = vmatpush1.bf16.msra.mxu0 %v1042
        %1104 = vmatprep.subr.bf16.mxu0 0
        %1105 = vmatpush1.bf16.msra.mxu0 %v1041
        %1106 = vmatprep.subr.bf16.mxu0 0
        %1107 = vmatpush1.bf16.msra.mxu0 %v1040
        %1108 = vmatprep.subr.bf16.mxu0 0
        %1109 = vmatpush1.bf16.msra.mxu0 %v1039
        %1110 = vmatprep.subr.bf16.mxu0 0
        %1111 = vmatpush1.bf16.msra.mxu0 %v1038
        %1112 = vmatprep.subr.bf16.mxu0 0
        %1113 = vmatpush1.bf16.msra.mxu0 %v1037
        %1114 = vmatprep.subr.bf16.mxu0 0
        %1115 = vmatpush1.bf16.msra.mxu0 %v1036
        %1116 = vmatprep.subr.bf16.mxu0 0
        %1117 = vmatpush2.bf16.msra.mxu0 %v1051
        %1118 = vmatprep.subr.bf16.mxu0 0
        %1119 = vmatpush2.bf16.msra.mxu0 %v1050
        %1120 = vmatprep.subr.bf16.mxu0 0
        %1121 = vmatpush2.bf16.msra.mxu0 %v1049
        %1122 = vmatprep.subr.bf16.mxu0 0
        %1123 = vmatpush2.bf16.msra.mxu0 %v1048
        %1124 = vmatprep.subr.bf16.mxu0 0
        %1125 = vmatpush2.bf16.msra.mxu0 %v1047
        %1126 = vmatprep.subr.bf16.mxu0 0
        %1127 = vmatpush2.bf16.msra.mxu0 %v1046
        %1128 = vmatprep.subr.bf16.mxu0 0
        %1129 = vmatpush2.bf16.msra.mxu0 %v1045
        %1130 = vmatprep.subr.bf16.mxu0 0
        %1131 = vmatpush2.bf16.msra.mxu0 %v1044
        %1132 = vmatprep.mubr.bf16.mxu0 %v830
        %1133 = vmatmul.mubr.bf16.gmra.mxu0 %v829
        %v1134 = vpop.f32.mrf.mxu0
        %v1135 = vadd.f32 %v906, %v1134
        %v1136 = vpop.f32.mrf.mxu0
        %v1137 = vpop.f32.mrf.mxu0
        %v1138 = vadd.f32 %v906, %v1137
        %v1139 = vpop.f32.mrf.mxu0
        %1140 = vmatprep.mubr.bf16.mxu0 %v834
        %1141 = vmatmul.mubr.bf16.gmra.mxu0 %v833
        %v1142 = vpop.f32.mrf.mxu0
        %v1143 = vadd.f32 %v906, %v1142
        %v1144 = vpop.f32.mrf.mxu0
        %v1145 = vpop.f32.mrf.mxu0
        %v1146 = vadd.f32 %v906, %v1145
        %v1147 = vpop.f32.mrf.mxu0
        %1148 = vdwg.mxu0
        %1149 = vmatprep.subr.bf16.mxu0 0
        %1150 = vmatpush1.bf16.msra.mxu0 %v1059
        %1151 = vmatprep.subr.bf16.mxu0 0
        %1152 = vmatpush1.bf16.msra.mxu0 %v1058
        %1153 = vmatprep.subr.bf16.mxu0 0
        %1154 = vmatpush1.bf16.msra.mxu0 %v1057
        %1155 = vmatprep.subr.bf16.mxu0 0
        %1156 = vmatpush1.bf16.msra.mxu0 %v1056
        %1157 = vmatprep.subr.bf16.mxu0 0
        %1158 = vmatpush1.bf16.msra.mxu0 %v1055
        %1159 = vmatprep.subr.bf16.mxu0 0
        %1160 = vmatpush1.bf16.msra.mxu0 %v1054
        %1161 = vmatprep.subr.bf16.mxu0 0
        %1162 = vmatpush1.bf16.msra.mxu0 %v1053
        %1163 = vmatprep.subr.bf16.mxu0 0
        %1164 = vmatpush1.bf16.msra.mxu0 %v1052
        %1165 = vmatprep.subr.bf16.mxu0 0
        %1166 = vmatpush2.bf16.msra.mxu0 %v1067
        %1167 = vmatprep.subr.bf16.mxu0 0
        %1168 = vmatpush2.bf16.msra.mxu0 %v1066
        %1169 = vmatprep.subr.bf16.mxu0 0
        %1170 = vmatpush2.bf16.msra.mxu0 %v1065
        %1171 = vmatprep.subr.bf16.mxu0 0
        %1172 = vmatpush2.bf16.msra.mxu0 %v1064
        %1173 = vmatprep.subr.bf16.mxu0 0
        %1174 = vmatpush2.bf16.msra.mxu0 %v1063
        %1175 = vmatprep.subr.bf16.mxu0 0
        %1176 = vmatpush2.bf16.msra.mxu0 %v1062
        %1177 = vmatprep.subr.bf16.mxu0 0
        %1178 = vmatpush2.bf16.msra.mxu0 %v1061
        %1179 = vmatprep.subr.bf16.mxu0 0
        %1180 = vmatpush2.bf16.msra.mxu0 %v1060
        %1181 = vmatprep.mubr.bf16.mxu0 %v832
        %1182 = vmatmul.mubr.bf16.gmra.mxu0 %v831
        %v1183 = vpop.f32.mrf.mxu0
        %v1184 = vadd.f32 %v1135, %v1183
        %v1185 = vpop.f32.mrf.mxu0
        %v1186 = vpop.f32.mrf.mxu0
        %v1187 = vadd.f32 %v1138, %v1186
        %v1188 = vpop.f32.mrf.mxu0
        %1189 = vmatprep.mubr.bf16.mxu0 %v836
        %1190 = vmatmul.mubr.bf16.gmra.mxu0 %v835
        %v1191 = vpop.f32.mrf.mxu0
        %v1192 = vadd.f32 %v1143, %v1191
        %v1193 = vpop.f32.mrf.mxu0
        %v1194 = vpop.f32.mrf.mxu0
        %v1195 = vadd.f32 %v1146, %v1194
        %v1196 = vpop.f32.mrf.mxu0
        %1197 = vdwg.mxu0
        %1198 = vst [vmem:[%s285] sm:$0xff] %v1184
        %1199 = vst [vmem:[%s285 + $0x8] sm:$0xff] %v1187
        %1200 = vst [vmem:[%s285 + $0x10] sm:$0xff] %v1192
        %1201 = vst [vmem:[%s285 + $0x18] sm:$0xff] %v1195
        %s1202 = sand.u32 %s142, 1
        %s1203 = scalar_lea.sflag [#allocation4], %s1202
        %s1204 = sand.u32 %s142, 1
        %s1205 = smul.addr %s1204, 32
        %s1206 = scalar_lea.vmem [#allocation10], %s1205
        // Predicated region
        $region57: #{tpu_custom_call.1} parent=39 // pred_check
          %p1207 = pneg %p152
        $region58: #{tpu_custom_call.1} parent=39 // pred_check_branch
          %1209 = sbr.rel (%p1207) target = $region60
        $region59: #{tpu_custom_call.1} parent=39 // pred_region
          %s1210 = smul.u32 4, %s24
          %s1212 = ssub.s32 512, 512
          %1213 = vsyncadd %s1203, %s1212
          %s1214 = smul.addr %s1210, 128
          %s1215 = scalar_lea.hbm %s5, %s1214
          %s1216 = sshll.u32 %s1206, 4
          %s1217 = int_to_ptr.vmem [resolvable:$true] %s1216
          %1222 = dma.vmem_to_hbm [thread:$0]  %s1217, 512, %s1215, %s1203, 128, 128, 8
        $region60: #{tpu_custom_call.1} parent=39 // pred_fallthru
          _
      $region40: #{tpu_custom_call.1} parent=5 // pred_fallthru
        _
      %p1223 = scmp.le.s32.totalorder 2, %s19
      // Predicated region
      $region61: #{tpu_custom_call.1} parent=5 // pred_check
        %p1224 = pneg %p1223
      $region62: #{tpu_custom_call.1} parent=5 // pred_check_branch
        %1226 = sbr.rel (%p1224) target = $region64
      $region63: #{tpu_custom_call.1} parent=5 // pred_region
        %s1227 = ssub.s32 %s19, 2
        // Predicated region
        $region65: #{tpu_custom_call.1} parent=63 // pred_check
          %p1228 = pneg %p158
        $region66: #{tpu_custom_call.1} parent=63 // pred_check_branch
          %1230 = sbr.rel (%p1228) target = $region68
        $region67: #{tpu_custom_call.1} parent=63 // pred_region
          %s1231 = sand.u32 %s143, 1
          %s1232 = scalar_lea.sflag [#allocation4], %s1231
          %s1233 = sand.u32 %s143, 1
          %s1234 = smul.addr %s1233, 32
          %s1235 = scalar_lea.vmem [#allocation10], %s1234
          %1236 = dma.done %s1232, 512
        $region68: #{tpu_custom_call.1} parent=63 // pred_fallthru
          _
      $region64: #{tpu_custom_call.1} parent=5 // pred_fallthru
        _
    $region6: #{tpu_custom_call.1} parent=1 // loop_footer
      %s23 = sadd.s32 1, %s19
    $region7: #{tpu_custom_call.1} parent=1 // loop_footer_branch
      %18 = sbr.rel target = $region3
    $region8: #{tpu_custom_call.1} parent=1 // loop_exit
      _
    %1237 = vsyncpa [#allocation3], 1
    %s1238 = scalar_lea.sflag [#allocation3], 1
    %1239 = vsyncpa %s1238, 1
    %1240 = vsyncpa [#allocation6], 1
    %1241 = vsyncpa [#allocation9], 1
    %1242 = vsyncpa [#allocation4], 1
    %s1243 = scalar_lea.sflag [#allocation4], 1
    %1244 = vsyncpa %s1243, 1

</llo_original>
